<compile_context>
chip_gen: v7x
topology: tpu7x:2x2x1
jax: 0.10.0
libtpu: 0.0.40
codegen_flags: <defaults>
</compile_context>

<pallas_src>
import jax
import jax.numpy as jnp
from jax.experimental import pallas as pl
from jax.experimental.pallas import tpu as pltpu


def _round_up(x, m):
    return ((x + m - 1) // m) * m


def _choose_block_b(batch):
    """Batch-tile size.

    * batch <= 16: single full-batch block (block dim == array dim satisfies
      the BlockSpec rule even for odd/tiny batches).
    * otherwise: multiple of 8, capped at 1024 rows (2 x 1024 x 784 x 4B
      ~= 6.1 MiB double-buffered f32 x, well under v5e's 16 MiB scoped-VMEM
      default), and sized so there are >= 2 grid steps for v7x's two
      TensorCores to share via dimension_semantics=("parallel",).
    """
    if batch <= 16:
        return batch
    return min(1024, _round_up(pl.cdiv(batch, 2), 8))


def _discriminator_kernel(x_ref, w1_ref, b1_ref, w2_ref, b2_ref, w3_ref,
                          b3_ref, o_ref):
    """One (TB, D) batch tile -> (TB, 1) logits.

    x is the only streamed operand; weights/biases are VMEM-resident.  x is
    cast to the MXU dtype in-kernel (VPU work hidden under the x DMA).  All
    accumulation, bias adds and LeakyReLU run in f32.
    """
    mxu_dtype = w1_ref.dtype
    x = x_ref[...].astype(mxu_dtype)

    # fc_1 + LeakyReLU(0.2)   (MXU, f32 accumulate)
    h1 = jnp.dot(x, w1_ref[...], preferred_element_type=jnp.float32) + b1_ref[...]
    h1 = jnp.maximum(h1, 0.2 * h1)

    # fc_2 + LeakyReLU(0.2)
    h2 = jnp.dot(h1.astype(mxu_dtype), w2_ref[...],
                 preferred_element_type=jnp.float32) + b2_ref[...]
    h2 = jnp.maximum(h2, 0.2 * h2)

    # fc_out: N == 1, so skip a degenerate 1-column MXU matmul; VPU multiply
    # + lane reduce against the f32 (1, H_pad) weight row, scalar bias (SMEM).
    logit = jnp.sum(h2 * w3_ref[...], axis=-1, keepdims=True) + b3_ref[0]
    o_ref[...] = logit.astype(o_ref.dtype)


def prepare_params(params, *, mxu_dtype=jnp.bfloat16):
    """Pad/cast the weights ONCE (hoisted out of the per-forward path).

    Hidden dim is zero-padded to a lane-aligned 128; zero rows/cols are
    mathematically inert (LeakyReLU(0) == 0).  Matmul weights are cast to
    `mxu_dtype` (bf16 by default -> MXU fast path on v5e/v6e/v7x); biases and
    the final 1-wide weight row stay f32.
    """
    w1, b1, w2, b2, w3, b3 = params
    d, h = w1.shape
    h_pad = _round_up(h, 128)
    f32 = jnp.float32
    w1_p = jnp.zeros((d, h_pad), mxu_dtype).at[:, :h].set(w1.astype(mxu_dtype))
    b1_p = jnp.zeros((1, h_pad), f32).at[:, :h].set(b1.reshape(1, h).astype(f32))
    w2_p = jnp.zeros((h_pad, h_pad), mxu_dtype).at[:h, :h].set(w2.astype(mxu_dtype))
    b2_p = jnp.zeros((1, h_pad), f32).at[:, :h].set(b2.reshape(1, h).astype(f32))
    w3_p = jnp.zeros((1, h_pad), f32).at[:, :h].set(w3.reshape(1, h).astype(f32))
    b3_s = b3.reshape(1).astype(f32)                    # SMEM scalar
    return (w1_p, b1_p, w2_p, b2_p, w3_p, b3_s)


def discriminator_forward(x_nchw, prepared_params, *, block_b=None):
    """x_nchw: (B, C, H, W). Returns (B, 1) float32 logits."""
    w1_p, b1_p, w2_p, b2_p, w3_p, b3_s = prepared_params
    batch = x_nchw.shape[0]
    x_flat = x_nchw.reshape(batch, -1)                  # torch.flatten(x, 1)
    d = x_flat.shape[1]
    assert w1_p.shape[0] == d, (w1_p.shape, d)
    h_pad = w1_p.shape[1]

    tb = _choose_block_b(batch) if block_b is None else block_b
    grid = pl.cdiv(batch, tb)     # trailing tile may be partial; extra rows
                                  # compute on unspecified data, sliced below.

    const = lambda i: (0, 0)      # weights/biases stay VMEM-resident
    mxu_itemsize = jnp.dtype(w1_p.dtype).itemsize
    x_itemsize = jnp.dtype(x_flat.dtype).itemsize
    cost = pl.CostEstimate(
        flops=2 * grid * tb * (d * h_pad + h_pad * h_pad + h_pad),
        transcendentals=0,
        bytes_accessed=(batch * d * x_itemsize              # x (streamed)
                        + (d + h_pad) * h_pad * mxu_itemsize  # w1, w2 (resident)
                        + 3 * h_pad * 4 + 4                  # b1, b2, w3, b3
                        + grid * tb * 4),                    # logits
    )

    out = pl.pallas_call(
        _discriminator_kernel,
        out_shape=jax.ShapeDtypeStruct((grid * tb, 1), jnp.float32),
        grid=(grid,),
        in_specs=[
            # x streamed directly (no padded HBM copy): only the batch axis is
            # tiled; last block dim is the full feature dim D.
            pl.BlockSpec((tb, d), lambda i: (i, 0)),
            pl.BlockSpec((d, h_pad), const),                  # w1
            pl.BlockSpec((1, h_pad), const),                  # b1
            pl.BlockSpec((h_pad, h_pad), const),              # w2
            pl.BlockSpec((1, h_pad), const),                  # b2
            pl.BlockSpec((1, h_pad), const),                  # w3 as a row
            pl.BlockSpec(memory_space=pltpu.MemorySpace.SMEM),  # b3 scalar
        ],
        out_specs=pl.BlockSpec((tb, 1), lambda i: (i, 0)),
        compiler_params=pltpu.CompilerParams(
            dimension_semantics=("parallel",),
        ),
        cost_estimate=cost,
    )(x_flat, w1_p, b1_p, w2_p, b2_p, w3_p, b3_s)

    return out[:batch]


def init_params(key, input_dim, hidden_dim):
    """PyTorch nn.Linear-style init (U[-1/sqrt(fan_in), 1/sqrt(fan_in)]).
    Weights stored as (in_features, out_features)."""
    def linear(k, fan_in, fan_out):
        kw, kb = jax.random.split(k)
        bound = 1.0 / jnp.sqrt(fan_in)
        w = jax.random.uniform(kw, (fan_in, fan_out), jnp.float32, -bound, bound)
        b = jax.random.uniform(kb, (1, fan_out), jnp.float32, -bound, bound)
        return w, b

    k1, k2, k3 = jax.random.split(key, 3)
    w1, b1 = linear(k1, input_dim, hidden_dim)
    w2, b2 = linear(k2, hidden_dim, hidden_dim)
    w3, b3 = linear(k3, hidden_dim, 1)
    return (w1, b1, w2, b2, w3, b3)


def _reference_forward(x_nchw, params):
    """Pure-JAX reference replicating the PyTorch forward semantics."""
    w1, b1, w2, b2, w3, b3 = params
    x = x_nchw.reshape(x_nchw.shape[0], -1)
    lrelu = lambda v: jnp.where(v > 0, v, 0.2 * v)
    x = lrelu(x @ w1 + b1)
    x = lrelu(x @ w2 + b2)
    return x @ w3 + b3


if __name__ == "__main__":
    key = jax.random.PRNGKey(0)
    k_x, k_x2, k_p = jax.random.split(key, 3)

    # MNIST-like shapes: batch=2, 1 channel, 28x28 -> input_dim=784, hidden=32
    B, C, H, W = 2, 1, 28, 28
    input_dim = C * H * W
    hidden_dim = 32

    x = jax.random.uniform(k_x, (B, C, H, W), jnp.float32)
    params = init_params(k_p, input_dim, hidden_dim)
    ref = _reference_forward(x, params)

    # f32 MXU path: exact vs reference (modulo reduction order).
    prep_f32 = prepare_params(params, mxu_dtype=jnp.float32)
    out_f32 = jax.block_until_ready(discriminator_forward(x, prep_f32))
    assert out_f32.shape == (B, 1), out_f32.shape
    assert jnp.allclose(out_f32, ref, atol=1e-5, rtol=1e-4), (out_f32, ref)

    # Default bf16-MXU path (f32 accumulation) — fast path on v5e/v6e/v7x.
    prep_bf16 = prepare_params(params)
    out_bf16 = jax.block_until_ready(discriminator_forward(x, prep_bf16))
    assert out_bf16.shape == (B, 1), out_bf16.shape
    assert jnp.allclose(out_bf16, ref, atol=5e-2, rtol=5e-2), (out_bf16, ref)

    # Multi-step grid with a partial trailing batch tile (exercises the
    # pl.cdiv grid + slice-off-unspecified-rows path).
    B2 = 20
    x2 = jax.random.uniform(k_x2, (B2, C, H, W), jnp.float32)
    ref2 = _reference_forward(x2, params)
    out2 = jax.block_until_ready(discriminator_forward(x2, prep_bf16))
    assert out2.shape == (B2, 1), out2.shape
    assert jnp.allclose(out2, ref2, atol=5e-2, rtol=5e-2), (out2, ref2)

    print("KERNEL_OK")
</pallas_src>

<mosaic_0001>
module attributes {stable_mosaic.version = 11 : i64} {
  func.func @_discriminator_kernel(%arg0: i32, %arg1: memref<2x784xf32, #tpu.memory_space<vmem>>, %arg2: memref<784x128xf32, #tpu.memory_space<vmem>>, %arg3: memref<1x128xf32, #tpu.memory_space<vmem>>, %arg4: memref<128x128xf32, #tpu.memory_space<vmem>>, %arg5: memref<1x128xf32, #tpu.memory_space<vmem>>, %arg6: memref<1x128xf32, #tpu.memory_space<vmem>>, %arg7: memref<1xf32, #tpu.memory_space<smem>>, %arg8: memref<2x1xf32, #tpu.memory_space<vmem>>) attributes {dimension_semantics = [#tpu.dimension_semantics<parallel>], iteration_bounds = array<i64: 1>, scalar_prefetch = 0 : i64, scratch_operands = 0 : i64, tpu.core_type = #tpu.core_type<tc>, window_params = [{transform_indices = @transform_0, window_bounds = array<i64: 2, 784>}, {pipeline_mode = #tpu.pipeline_mode<synchronous>, transform_indices = @transform_1, window_bounds = array<i64: 784, 128>}, {pipeline_mode = #tpu.pipeline_mode<synchronous>, transform_indices = @transform_2, window_bounds = array<i64: 1, 128>}, {pipeline_mode = #tpu.pipeline_mode<synchronous>, transform_indices = @transform_3, window_bounds = array<i64: 128, 128>}, {pipeline_mode = #tpu.pipeline_mode<synchronous>, transform_indices = @transform_4, window_bounds = array<i64: 1, 128>}, {pipeline_mode = #tpu.pipeline_mode<synchronous>, transform_indices = @transform_5, window_bounds = array<i64: 1, 128>}, {transform_indices = @transform_6, window_bounds = array<i64: 1>}, {transform_indices = @transform_7, window_bounds = array<i64: 2, 1>}]} {
    %c0 = arith.constant 0 : index
    %c0_0 = arith.constant 0 : index
    %0 = vector.load %arg1[%c0, %c0_0] : memref<2x784xf32, #tpu.memory_space<vmem>>, vector<2x784xf32>
    %c0_1 = arith.constant 0 : index
    %c0_2 = arith.constant 0 : index
    %1 = vector.load %arg2[%c0_1, %c0_2] : memref<784x128xf32, #tpu.memory_space<vmem>>, vector<784x128xf32>
    %cst = arith.constant dense<0.000000e+00> : vector<2x128xf32>
    %2 = tpu.matmul %0, %1, %cst {dimension_numbers = #tpu.dot_dimension_numbers<[1], [0], [0], [1], [0, 0, 1, 1], [], []>} : vector<2x784xf32>, vector<784x128xf32>, vector<2x128xf32> -> vector<2x128xf32>
    %c0_3 = arith.constant 0 : index
    %c0_4 = arith.constant 0 : index
    %3 = vector.load %arg3[%c0_3, %c0_4] : memref<1x128xf32, #tpu.memory_space<vmem>>, vector<1x128xf32>
    %4 = vector.broadcast %3 : vector<1x128xf32> to vector<2x128xf32>
    %5 = arith.addf %2, %4 : vector<2x128xf32>
    %cst_5 = arith.constant 2.000000e-01 : f32
    %6 = vector.broadcast %cst_5 : f32 to vector<2x128xf32>
    %7 = arith.mulf %6, %5 : vector<2x128xf32>
    %8 = arith.maximumf %5, %7 : vector<2x128xf32>
    %c0_6 = arith.constant 0 : index
    %c0_7 = arith.constant 0 : index
    %9 = vector.load %arg4[%c0_6, %c0_7] : memref<128x128xf32, #tpu.memory_space<vmem>>, vector<128x128xf32>
    %cst_8 = arith.constant dense<0.000000e+00> : vector<2x128xf32>
    %10 = tpu.matmul %8, %9, %cst_8 {dimension_numbers = #tpu.dot_dimension_numbers<[1], [0], [0], [1], [0, 0, 1, 1], [], []>} : vector<2x128xf32>, vector<128x128xf32>, vector<2x128xf32> -> vector<2x128xf32>
    %c0_9 = arith.constant 0 : index
    %c0_10 = arith.constant 0 : index
    %11 = vector.load %arg5[%c0_9, %c0_10] : memref<1x128xf32, #tpu.memory_space<vmem>>, vector<1x128xf32>
    %12 = vector.broadcast %11 : vector<1x128xf32> to vector<2x128xf32>
    %13 = arith.addf %10, %12 : vector<2x128xf32>
    %cst_11 = arith.constant 2.000000e-01 : f32
    %14 = vector.broadcast %cst_11 : f32 to vector<2x128xf32>
    %15 = arith.mulf %14, %13 : vector<2x128xf32>
    %16 = arith.maximumf %13, %15 : vector<2x128xf32>
    %c0_12 = arith.constant 0 : index
    %c0_13 = arith.constant 0 : index
    %17 = vector.load %arg6[%c0_12, %c0_13] : memref<1x128xf32, #tpu.memory_space<vmem>>, vector<1x128xf32>
    %18 = vector.broadcast %17 : vector<1x128xf32> to vector<2x128xf32>
    %19 = arith.mulf %16, %18 : vector<2x128xf32>
    %cst_14 = arith.constant dense<0.000000e+00> : vector<2xf32>
    %20 = vector.multi_reduction <add>, %19, %cst_14 [1] : vector<2x128xf32> to vector<2xf32>
    %21 = vector.shape_cast %20 : vector<2xf32> to vector<2x1xf32>
    %c0_15 = arith.constant 0 : index
    %22 = memref.load %arg7[%c0_15] : memref<1xf32, #tpu.memory_space<smem>>
    %23 = vector.broadcast %22 : f32 to vector<2x1xf32>
    %24 = arith.addf %21, %23 : vector<2x1xf32>
    %c0_16 = arith.constant 0 : index
    %c0_17 = arith.constant 0 : index
    %25 = vector.load %arg8[%c0_16, %c0_17] : memref<2x1xf32, #tpu.memory_space<vmem>>, vector<2x1xf32>
    tpu.vector_store %arg8[%c0_16, %c0_17], %24 {strides = array<i32>} : memref<2x1xf32, #tpu.memory_space<vmem>>, vector<2x1xf32>,
    return
  }
  func.func @transform_0(%arg0: i32) -> (i32, i32) {
    %c0_i32 = arith.constant 0 : i32
    %c0_i32_0 = arith.constant 0 : i32
    return %arg0, %c0_i32 : i32, i32
  }
  func.func @transform_1(%arg0: i32) -> (i32, i32) {
    %c0_i32 = arith.constant 0 : i32
    %c0_i32_0 = arith.constant 0 : i32
    %c0_i32_1 = arith.constant 0 : i32
    return %c0_i32, %c0_i32_0 : i32, i32
  }
  func.func @transform_2(%arg0: i32) -> (i32, i32) {
    %c0_i32 = arith.constant 0 : i32
    %c0_i32_0 = arith.constant 0 : i32
    %c0_i32_1 = arith.constant 0 : i32
    return %c0_i32, %c0_i32_0 : i32, i32
  }
  func.func @transform_3(%arg0: i32) -> (i32, i32) {
    %c0_i32 = arith.constant 0 : i32
    %c0_i32_0 = arith.constant 0 : i32
    %c0_i32_1 = arith.constant 0 : i32
    return %c0_i32, %c0_i32_0 : i32, i32
  }
  func.func @transform_4(%arg0: i32) -> (i32, i32) {
    %c0_i32 = arith.constant 0 : i32
    %c0_i32_0 = arith.constant 0 : i32
    %c0_i32_1 = arith.constant 0 : i32
    return %c0_i32, %c0_i32_0 : i32, i32
  }
  func.func @transform_5(%arg0: i32) -> (i32, i32) {
    %c0_i32 = arith.constant 0 : i32
    %c0_i32_0 = arith.constant 0 : i32
    %c0_i32_1 = arith.constant 0 : i32
    return %c0_i32, %c0_i32_0 : i32, i32
  }
  func.func @transform_6(%arg0: i32) -> i32 {
    %c0_i32 = arith.constant 0 : i32
    %c0_i32_0 = arith.constant 0 : i32
    return %c0_i32 : i32
  }
  func.func @transform_7(%arg0: i32) -> (i32, i32) {
    %c0_i32 = arith.constant 0 : i32
    %c0_i32_0 = arith.constant 0 : i32
    return %arg0, %c0_i32 : i32, i32
  }
}

</mosaic_0001>

<llo_original>
// kernel: tpu_custom_call.1
$region0: #{tpu_custom_call.1}
  #allocation0 [shape = 'u32[]', space=smem, size = 0x4, offset = 0x4, fixed_abs, tag = 'smem constant byte address 0x4 - core index']
  #allocation1 [shape = 'u32[144,128]{1,0:T(1,128)}', space=vmem, size = 0x12000, scoped, tag = 'internal scratch']
  #allocation2 [shape = 'f32[1]{0:T(128)S(6)}', space=smem, size = 0x200, scoped, tag = 'scoped memory for tpu_custom_call.1']
  %s0 = inlined_call_operand.hbm [shape: f32[2,784], index: 0, kind: input, shape index: {}]
  %s1 = inlined_call_operand.hbm [shape: f32[784,128], index: 1, kind: input, shape index: {}]
  %s2 = inlined_call_operand.vmem [shape: f32[1,128], index: 2, kind: input, shape index: {}]
  %s3 = inlined_call_operand.hbm [shape: f32[128,128], index: 3, kind: input, shape index: {}]
  %s4 = inlined_call_operand.vmem [shape: f32[1,128], index: 4, kind: input, shape index: {}]
  %s5 = inlined_call_operand.vmem [shape: f32[1,128], index: 5, kind: input, shape index: {}]
  %s6 = inlined_call_operand.<no memory space> [shape: f32[1], index: 6, kind: input, shape index: {}]
  %s7 = inlined_call_operand.vmem [shape: f32[2,1], index: 7, kind: output, shape index: {}]
  %s8 = sld [smem:[#allocation0]]
  $region50: #{tpu_custom_call.1} parent=0
    _
  %s10 = ssub.s32 1, %s8
  %s11 = scalar_select 0, %s10, %s8
  %12 = sst [smem:[#allocation2]] %s6
  $region1: #{tpu_custom_call.1} parent=0
    #allocation3 [shape = 'u8[7168]{0}', space=vmem, size = 0x1c00, scoped, tag = 'input window, operand 0, single buffered']
    #allocation4 [shape = 's32[1]{0}', space=sflag, size = 0x4, scoped, tag = 'scoped memory for tpu_custom_call.1']
    #allocation5 [shape = 'u8[401408]{0}', space=vmem, size = 0x62000, scoped, tag = 'input window, operand 1, single buffered']
    #allocation6 [shape = 's32[1]{0}', space=sflag, size = 0x4, scoped, tag = 'scoped memory for tpu_custom_call.1']
    #allocation7 [shape = 'u8[65536]{0}', space=vmem, size = 0x10000, scoped, tag = 'input window, operand 3, single buffered']
    %13 = vsyncpa [#allocation4], 0
    %14 = vsyncpa [#allocation6], 0
    // Predicated region
    $region2: #{tpu_custom_call.1} parent=1 // pred_check
      _
    $region3: #{tpu_custom_call.1} parent=1 // pred_check_branch
      %16 = sbr.rel (0) target = $region5
    $region4: #{tpu_custom_call.1} parent=1 // pred_region
      %s18 = ssub.s32 224, 224
      %19 = vsyncadd [#allocation4], %s18
      %s21 = sshll.u32 [#allocation3], 4
      %s22 = int_to_ptr.vmem [resolvable:$true] %s21
      %24 = dma.hbm_to_vmem [thread:$0]  %s0, 224, %s22, [#allocation4]
    $region5: #{tpu_custom_call.1} parent=1 // pred_fallthru
      _
    // Predicated region
    $region6: #{tpu_custom_call.1} parent=1 // pred_check
      _
    $region7: #{tpu_custom_call.1} parent=1 // pred_check_branch
      %26 = sbr.rel (0) target = $region9
    $region8: #{tpu_custom_call.1} parent=1 // pred_region
      %s28 = ssub.s32 12544, 12544
      %29 = vsyncadd [#allocation6], %s28
      %s30 = sshll.u32 [#allocation5], 4
      %s31 = int_to_ptr.vmem [resolvable:$true] %s30
      %36 = dma.hbm_to_vmem [thread:$0]  %s1, 12544, %s31, [#allocation6], 128, 128, 8
    $region9: #{tpu_custom_call.1} parent=1 // pred_fallthru
      _
    // Predicated region
    $region10: #{tpu_custom_call.1} parent=1 // pred_check
      _
    $region11: #{tpu_custom_call.1} parent=1 // pred_check_branch
      %38 = sbr.rel (0) target = $region13
    $region12: #{tpu_custom_call.1} parent=1 // pred_region
      _
    $region13: #{tpu_custom_call.1} parent=1 // pred_fallthru
      _
    // Predicated region
    $region14: #{tpu_custom_call.1} parent=1 // pred_check
      _
    $region15: #{tpu_custom_call.1} parent=1 // pred_check_branch
      %40 = sbr.rel (0) target = $region17
    $region16: #{tpu_custom_call.1} parent=1 // pred_region
      %s42 = ssub.s32 2048, 2048
      %43 = vsyncadd [#allocation6], %s42
      %s44 = sshll.u32 [#allocation7], 4
      %s45 = int_to_ptr.vmem [resolvable:$true] %s44
      %50 = dma.hbm_to_vmem [thread:$0]  %s3, 2048, %s45, [#allocation6], 128, 128, 8
    $region17: #{tpu_custom_call.1} parent=1 // pred_fallthru
      _
    // Predicated region
    $region18: #{tpu_custom_call.1} parent=1 // pred_check
      _
    $region19: #{tpu_custom_call.1} parent=1 // pred_check_branch
      %52 = sbr.rel (0) target = $region21
    $region20: #{tpu_custom_call.1} parent=1 // pred_region
      _
    $region21: #{tpu_custom_call.1} parent=1 // pred_fallthru
      _
    // Predicated region
    $region22: #{tpu_custom_call.1} parent=1 // pred_check
      _
    $region23: #{tpu_custom_call.1} parent=1 // pred_check_branch
      %54 = sbr.rel (0) target = $region25
    $region24: #{tpu_custom_call.1} parent=1 // pred_region
      _
    $region25: #{tpu_custom_call.1} parent=1 // pred_fallthru
      _
    // Predicated region
    $region26: #{tpu_custom_call.1} parent=1 // pred_check
      _
    $region27: #{tpu_custom_call.1} parent=1 // pred_check_branch
      %56 = sbr.rel (0) target = $region29
    $region28: #{tpu_custom_call.1} parent=1 // pred_region
      _
    $region29: #{tpu_custom_call.1} parent=1 // pred_fallthru
      _
    // Predicated region
    $region30: #{tpu_custom_call.1} parent=1 // pred_check
      _
    $region31: #{tpu_custom_call.1} parent=1 // pred_check_branch
      %58 = sbr.rel (0) target = $region33
    $region32: #{tpu_custom_call.1} parent=1 // pred_region
      %59 = dma.done [#allocation4], 224
    $region33: #{tpu_custom_call.1} parent=1 // pred_fallthru
      _
    // Predicated region
    $region34: #{tpu_custom_call.1} parent=1 // pred_check
      _
    $region35: #{tpu_custom_call.1} parent=1 // pred_check_branch
      %61 = sbr.rel (0) target = $region37
    $region36: #{tpu_custom_call.1} parent=1 // pred_region
      %62 = dma.done [#allocation6], 12544
    $region37: #{tpu_custom_call.1} parent=1 // pred_fallthru
      _
    // Predicated region
    $region38: #{tpu_custom_call.1} parent=1 // pred_check
      _
    $region39: #{tpu_custom_call.1} parent=1 // pred_check_branch
      %64 = sbr.rel (0) target = $region41
    $region40: #{tpu_custom_call.1} parent=1 // pred_region
      %65 = dma.done [#allocation6], 2048
    $region41: #{tpu_custom_call.1} parent=1 // pred_fallthru
      _
    %v66 = vld [vmem:[#allocation3] sm:$0xff]
    %v67 = vld [vmem:[#allocation3 + $0x8] sm:$0x3f]
    %v68 = vld [vmem:[#allocation5] sm:$0xff]
    %v69 = vld [vmem:[#allocation5 + $0x8] sm:$0xff]
    %v70 = vld [vmem:[#allocation5 + $0x10] sm:$0xff]
    %v71 = vld [vmem:[#allocation5 + $0x18] sm:$0xff]
    %v72 = vld [vmem:[#allocation5 + $0x20] sm:$0xff]
    %v73 = vld [vmem:[#allocation5 + $0x28] sm:$0xff]
    %v74 = vld [vmem:[#allocation5 + $0x30] sm:$0xff]
    %v75 = vld [vmem:[#allocation5 + $0x38] sm:$0xff]
    %v76 = vld [vmem:[#allocation5 + $0x40] sm:$0xff]
    %v77 = vld [vmem:[#allocation5 + $0x48] sm:$0xff]
    %v78 = vld [vmem:[#allocation5 + $0x50] sm:$0xff]
    %v79 = vld [vmem:[#allocation5 + $0x58] sm:$0xff]
    %v80 = vld [vmem:[#allocation5 + $0x60] sm:$0xff]
    %v81 = vld [vmem:[#allocation5 + $0x68] sm:$0xff]
    %v82 = vld [vmem:[#allocation5 + $0x70] sm:$0xff]
    %v83 = vld [vmem:[#allocation5 + $0x78] sm:$0xff]
    %v84 = vld [vmem:[#allocation5 + $0x80] sm:$0xff]
    %v85 = vld [vmem:[#allocation5 + $0x88] sm:$0xff]
    %v86 = vld [vmem:[#allocation5 + $0x90] sm:$0xff]
    %v87 = vld [vmem:[#allocation5 + $0x98] sm:$0xff]
    %v88 = vld [vmem:[#allocation5 + $0xa0] sm:$0xff]
    %v89 = vld [vmem:[#allocation5 + $0xa8] sm:$0xff]
    %v90 = vld [vmem:[#allocation5 + $0xb0] sm:$0xff]
    %v91 = vld [vmem:[#allocation5 + $0xb8] sm:$0xff]
    %v92 = vld [vmem:[#allocation5 + $0xc0] sm:$0xff]
    %v93 = vld [vmem:[#allocation5 + $0xc8] sm:$0xff]
    %v94 = vld [vmem:[#allocation5 + $0xd0] sm:$0xff]
    %v95 = vld [vmem:[#allocation5 + $0xd8] sm:$0xff]
    %v96 = vld [vmem:[#allocation5 + $0xe0] sm:$0xff]
    %v97 = vld [vmem:[#allocation5 + $0xe8] sm:$0xff]
    %v98 = vld [vmem:[#allocation5 + $0xf0] sm:$0xff]
    %v99 = vld [vmem:[#allocation5 + $0xf8] sm:$0xff]
    %v100 = vld [vmem:[#allocation5 + $0x100] sm:$0xff]
    %v101 = vld [vmem:[#allocation5 + $0x108] sm:$0xff]
    %v102 = vld [vmem:[#allocation5 + $0x110] sm:$0xff]
    %v103 = vld [vmem:[#allocation5 + $0x118] sm:$0xff]
    %v104 = vld [vmem:[#allocation5 + $0x120] sm:$0xff]
    %v105 = vld [vmem:[#allocation5 + $0x128] sm:$0xff]
    %v106 = vld [vmem:[#allocation5 + $0x130] sm:$0xff]
    %v107 = vld [vmem:[#allocation5 + $0x138] sm:$0xff]
    %v108 = vld [vmem:[#allocation5 + $0x140] sm:$0xff]
    %v109 = vld [vmem:[#allocation5 + $0x148] sm:$0xff]
    %v110 = vld [vmem:[#allocation5 + $0x150] sm:$0xff]
    %v111 = vld [vmem:[#allocation5 + $0x158] sm:$0xff]
    %v112 = vld [vmem:[#allocation5 + $0x160] sm:$0xff]
    %v113 = vld [vmem:[#allocation5 + $0x168] sm:$0xff]
    %v114 = vld [vmem:[#allocation5 + $0x170] sm:$0xff]
    %v115 = vld [vmem:[#allocation5 + $0x178] sm:$0xff]
    %v116 = vld [vmem:[#allocation5 + $0x180] sm:$0xff]
    %v117 = vld [vmem:[#allocation5 + $0x188] sm:$0xff]
    %v118 = vld [vmem:[#allocation5 + $0x190] sm:$0xff]
    %v119 = vld [vmem:[#allocation5 + $0x198] sm:$0xff]
    %v120 = vld [vmem:[#allocation5 + $0x1a0] sm:$0xff]
    %v121 = vld [vmem:[#allocation5 + $0x1a8] sm:$0xff]
    %v122 = vld [vmem:[#allocation5 + $0x1b0] sm:$0xff]
    %v123 = vld [vmem:[#allocation5 + $0x1b8] sm:$0xff]
    %v124 = vld [vmem:[#allocation5 + $0x1c0] sm:$0xff]
    %v125 = vld [vmem:[#allocation5 + $0x1c8] sm:$0xff]
    %v126 = vld [vmem:[#allocation5 + $0x1d0] sm:$0xff]
    %v127 = vld [vmem:[#allocation5 + $0x1d8] sm:$0xff]
    %v128 = vld [vmem:[#allocation5 + $0x1e0] sm:$0xff]
    %v129 = vld [vmem:[#allocation5 + $0x1e8] sm:$0xff]
    %v130 = vld [vmem:[#allocation5 + $0x1f0] sm:$0xff]
    %v131 = vld [vmem:[#allocation5 + $0x1f8] sm:$0xff]
    %v132 = vld [vmem:[#allocation5 + $0x200] sm:$0xff]
    %v133 = vld [vmem:[#allocation5 + $0x208] sm:$0xff]
    %v134 = vld [vmem:[#allocation5 + $0x210] sm:$0xff]
    %v135 = vld [vmem:[#allocation5 + $0x218] sm:$0xff]
    %v136 = vld [vmem:[#allocation5 + $0x220] sm:$0xff]
    %v137 = vld [vmem:[#allocation5 + $0x228] sm:$0xff]
    %v138 = vld [vmem:[#allocation5 + $0x230] sm:$0xff]
    %v139 = vld [vmem:[#allocation5 + $0x238] sm:$0xff]
    %v140 = vld [vmem:[#allocation5 + $0x240] sm:$0xff]
    %v141 = vld [vmem:[#allocation5 + $0x248] sm:$0xff]
    %v142 = vld [vmem:[#allocation5 + $0x250] sm:$0xff]
    %v143 = vld [vmem:[#allocation5 + $0x258] sm:$0xff]
    %v144 = vld [vmem:[#allocation5 + $0x260] sm:$0xff]
    %v145 = vld [vmem:[#allocation5 + $0x268] sm:$0xff]
    %v146 = vld [vmem:[#allocation5 + $0x270] sm:$0xff]
    %v147 = vld [vmem:[#allocation5 + $0x278] sm:$0xff]
    %v148 = vld [vmem:[#allocation5 + $0x280] sm:$0xff]
    %v149 = vld [vmem:[#allocation5 + $0x288] sm:$0xff]
    %v150 = vld [vmem:[#allocation5 + $0x290] sm:$0xff]
    %v151 = vld [vmem:[#allocation5 + $0x298] sm:$0xff]
    %v152 = vld [vmem:[#allocation5 + $0x2a0] sm:$0xff]
    %v153 = vld [vmem:[#allocation5 + $0x2a8] sm:$0xff]
    %v154 = vld [vmem:[#allocation5 + $0x2b0] sm:$0xff]
    %v155 = vld [vmem:[#allocation5 + $0x2b8] sm:$0xff]
    %v156 = vld [vmem:[#allocation5 + $0x2c0] sm:$0xff]
    %v157 = vld [vmem:[#allocation5 + $0x2c8] sm:$0xff]
    %v158 = vld [vmem:[#allocation5 + $0x2d0] sm:$0xff]
    %v159 = vld [vmem:[#allocation5 + $0x2d8] sm:$0xff]
    %v160 = vld [vmem:[#allocation5 + $0x2e0] sm:$0xff]
    %v161 = vld [vmem:[#allocation5 + $0x2e8] sm:$0xff]
    %v162 = vld [vmem:[#allocation5 + $0x2f0] sm:$0xff]
    %v163 = vld [vmem:[#allocation5 + $0x2f8] sm:$0xff]
    %v164 = vld [vmem:[#allocation5 + $0x300] sm:$0xff]
    %v165 = vld [vmem:[#allocation5 + $0x308] sm:$0xff]
    %v166 = vld [vmem:[%s2] sm:$0x1]
    %v168 = vlaneseq
    %v169 = vshrl.u32 %v168, 7
    %v170 = vsub.s32 0, %v169
    %v171 = vrot.slane %v166, %v170
    %v175 = vcombine.high %v66, %v66
    %v177 = vunpack.c.l.s4 1983009808
    %v178 = vunpack.c.0.s8 %v177
    %v179 = vlaneseq
    %v180 = vshrl.u32 %v179, 7
    %v181 = vsub.s32 %v178, %v180
    %v182 = vrot.slane %v66, %v181
    %v184 = vunpack.c.l.s4 1983009808
    %v185 = vunpack.c.0.s8 %v184
    %v186 = vlaneseq
    %v187 = vshrl.u32 %v186, 7
    %v188 = vsub.s32 %v185, %v187
    %v189 = vrot.slane %v175, %v188
    %v190 = vcombine.high %v182, %v182
    %v191 = vcombine.high %v189, %v189
    %v192 = vcombine.high %v67, %v67
    %v194 = vunpack.c.l.s4 1983009808
    %v195 = vunpack.c.0.s8 %v194
    %v196 = vlaneseq
    %v197 = vshrl.u32 %v196, 7
    %v198 = vsub.s32 %v195, %v197
    %v199 = vrot.slane %v67, %v198
    %v201 = vunpack.c.l.s4 1983009808
    %v202 = vunpack.c.0.s8 %v201
    %v203 = vlaneseq
    %v204 = vshrl.u32 %v203, 7
    %v205 = vsub.s32 %v202, %v204
    %v206 = vrot.slane %v192, %v205
    %v207 = vcombine.high %v199, %v199
    %vm214 = vcmask 130048
    %v215 = vsel %vm214, %v206, 0
    %217 = vmatprep.subr.mxu0 0.0
    %218 = vmatpush1.msra.mxu0 %v68
    %219 = vmatprep.subr.mxu0 0.0
    %220 = vmatpush1.msra.mxu0 %v69
    %221 = vmatprep.subr.mxu0 0.0
    %222 = vmatpush1.msra.mxu0 %v70
    %223 = vmatprep.subr.mxu0 0.0
    %224 = vmatpush1.msra.mxu0 %v71
    %225 = vmatprep.subr.mxu0 0.0
    %226 = vmatpush1.msra.mxu0 %v72
    %227 = vmatprep.subr.mxu0 0.0
    %228 = vmatpush1.msra.mxu0 %v73
    %229 = vmatprep.subr.mxu0 0.0
    %230 = vmatpush1.msra.mxu0 %v74
    %231 = vmatprep.subr.mxu0 0.0
    %232 = vmatpush1.msra.mxu0 %v75
    %233 = vmatprep.subr.mxu0 0.0
    %234 = vmatpush1.msra.mxu0 %v76
    %235 = vmatprep.subr.mxu0 0.0
    %236 = vmatpush1.msra.mxu0 %v77
    %237 = vmatprep.subr.mxu0 0.0
    %238 = vmatpush1.msra.mxu0 %v78
    %239 = vmatprep.subr.mxu0 0.0
    %240 = vmatpush1.msra.mxu0 %v79
    %241 = vmatprep.subr.mxu0 0.0
    %242 = vmatpush1.msra.mxu0 %v80
    %243 = vmatprep.subr.mxu0 0.0
    %244 = vmatpush1.msra.mxu0 %v81
    %245 = vmatprep.subr.mxu0 0.0
    %246 = vmatpush1.msra.mxu0 %v82
    %247 = vmatprep.subr.mxu0 0.0
    %248 = vmatpush1.msra.mxu0 %v83
    %249 = vmatprep.subr.mxu0 0.0
    %250 = vmatpush1.msra.mxu0 %v84
    %251 = vmatprep.subr.mxu0 0.0
    %252 = vmatpush1.msra.mxu0 %v85
    %253 = vmatprep.subr.mxu0 0.0
    %254 = vmatpush1.msra.mxu0 %v86
    %255 = vmatprep.subr.mxu0 0.0
    %256 = vmatpush1.msra.mxu0 %v87
    %257 = vmatprep.subr.mxu0 0.0
    %258 = vmatpush1.msra.mxu0 %v88
    %259 = vmatprep.subr.mxu0 0.0
    %260 = vmatpush1.msra.mxu0 %v89
    %261 = vmatprep.subr.mxu0 0.0
    %262 = vmatpush1.msra.mxu0 %v90
    %263 = vmatprep.subr.mxu0 0.0
    %264 = vmatpush1.msra.mxu0 %v91
    %265 = vmatprep.subr.mxu0 0.0
    %266 = vmatpush1.msra.mxu0 %v92
    %267 = vmatprep.subr.mxu0 0.0
    %268 = vmatpush1.msra.mxu0 %v93
    %269 = vmatprep.subr.mxu0 0.0
    %270 = vmatpush1.msra.mxu0 %v94
    %271 = vmatprep.subr.mxu0 0.0
    %272 = vmatpush1.msra.mxu0 %v95
    %273 = vmatprep.subr.mxu0 0.0
    %274 = vmatpush1.msra.mxu0 %v96
    %275 = vmatprep.subr.mxu0 0.0
    %276 = vmatpush1.msra.mxu0 %v97
    %277 = vmatprep.subr.mxu0 0.0
    %278 = vmatpush1.msra.mxu0 %v98
    %279 = vmatprep.subr.mxu0 0.0
    %280 = vmatpush1.msra.mxu0 %v99
    %281 = vmatprep.mubr.f32.mxu0 %v190
    %282 = vmatmul.mubr.f32.gmra.mrb[0].mxu0 %v182
    %v283 = vpop.f32.mrb[0].mxu0
    %v284 = vadd.f32 %v171, %v283
    %v285 = vpop.f32.mrb[0].mxu0
    %286 = vdwg.mxu0
    %287 = vmatprep.subr.mxu0 0.0
    %288 = vmatpush1.msra.mxu0 %v100
    %289 = vmatprep.subr.mxu0 0.0
    %290 = vmatpush1.msra.mxu0 %v101
    %291 = vmatprep.subr.mxu0 0.0
    %292 = vmatpush1.msra.mxu0 %v102
    %293 = vmatprep.subr.mxu0 0.0
    %294 = vmatpush1.msra.mxu0 %v103
    %295 = vmatprep.subr.mxu0 0.0
    %296 = vmatpush1.msra.mxu0 %v104
    %297 = vmatprep.subr.mxu0 0.0
    %298 = vmatpush1.msra.mxu0 %v105
    %299 = vmatprep.subr.mxu0 0.0
    %300 = vmatpush1.msra.mxu0 %v106
    %301 = vmatprep.subr.mxu0 0.0
    %302 = vmatpush1.msra.mxu0 %v107
    %303 = vmatprep.subr.mxu0 0.0
    %304 = vmatpush1.msra.mxu0 %v108
    %305 = vmatprep.subr.mxu0 0.0
    %306 = vmatpush1.msra.mxu0 %v109
    %307 = vmatprep.subr.mxu0 0.0
    %308 = vmatpush1.msra.mxu0 %v110
    %309 = vmatprep.subr.mxu0 0.0
    %310 = vmatpush1.msra.mxu0 %v111
    %311 = vmatprep.subr.mxu0 0.0
    %312 = vmatpush1.msra.mxu0 %v112
    %313 = vmatprep.subr.mxu0 0.0
    %314 = vmatpush1.msra.mxu0 %v113
    %315 = vmatprep.subr.mxu0 0.0
    %316 = vmatpush1.msra.mxu0 %v114
    %317 = vmatprep.subr.mxu0 0.0
    %318 = vmatpush1.msra.mxu0 %v115
    %319 = vmatprep.subr.mxu0 0.0
    %320 = vmatpush1.msra.mxu0 %v116
    %321 = vmatprep.subr.mxu0 0.0
    %322 = vmatpush1.msra.mxu0 %v117
    %323 = vmatprep.subr.mxu0 0.0
    %324 = vmatpush1.msra.mxu0 %v118
    %325 = vmatprep.subr.mxu0 0.0
    %326 = vmatpush1.msra.mxu0 %v119
    %327 = vmatprep.subr.mxu0 0.0
    %328 = vmatpush1.msra.mxu0 %v120
    %329 = vmatprep.subr.mxu0 0.0
    %330 = vmatpush1.msra.mxu0 %v121
    %331 = vmatprep.subr.mxu0 0.0
    %332 = vmatpush1.msra.mxu0 %v122
    %333 = vmatprep.subr.mxu0 0.0
    %334 = vmatpush1.msra.mxu0 %v123
    %335 = vmatprep.subr.mxu0 0.0
    %336 = vmatpush1.msra.mxu0 %v124
    %337 = vmatprep.subr.mxu0 0.0
    %338 = vmatpush1.msra.mxu0 %v125
    %339 = vmatprep.subr.mxu0 0.0
    %340 = vmatpush1.msra.mxu0 %v126
    %341 = vmatprep.subr.mxu0 0.0
    %342 = vmatpush1.msra.mxu0 %v127
    %343 = vmatprep.subr.mxu0 0.0
    %344 = vmatpush1.msra.mxu0 %v128
    %345 = vmatprep.subr.mxu0 0.0
    %346 = vmatpush1.msra.mxu0 %v129
    %347 = vmatprep.subr.mxu0 0.0
    %348 = vmatpush1.msra.mxu0 %v130
    %349 = vmatprep.subr.mxu0 0.0
    %350 = vmatpush1.msra.mxu0 %v131
    %351 = vmatprep.mubr.f32.mxu0 %v191
    %352 = vmatmul.mubr.f32.gmra.mrb[0].mxu0 %v189
    %v353 = vpop.f32.mrb[0].mxu0
    %v354 = vadd.f32 %v284, %v353
    %v355 = vpop.f32.mrb[0].mxu0
    %356 = vdwg.mxu0
    %357 = vmatprep.subr.mxu0 0.0
    %358 = vmatpush1.msra.mxu0 %v132
    %359 = vmatprep.subr.mxu0 0.0
    %360 = vmatpush1.msra.mxu0 %v133
    %361 = vmatprep.subr.mxu0 0.0
    %362 = vmatpush1.msra.mxu0 %v134
    %363 = vmatprep.subr.mxu0 0.0
    %364 = vmatpush1.msra.mxu0 %v135
    %365 = vmatprep.subr.mxu0 0.0
    %366 = vmatpush1.msra.mxu0 %v136
    %367 = vmatprep.subr.mxu0 0.0
    %368 = vmatpush1.msra.mxu0 %v137
    %369 = vmatprep.subr.mxu0 0.0
    %370 = vmatpush1.msra.mxu0 %v138
    %371 = vmatprep.subr.mxu0 0.0
    %372 = vmatpush1.msra.mxu0 %v139
    %373 = vmatprep.subr.mxu0 0.0
    %374 = vmatpush1.msra.mxu0 %v140
    %375 = vmatprep.subr.mxu0 0.0
    %376 = vmatpush1.msra.mxu0 %v141
    %377 = vmatprep.subr.mxu0 0.0
    %378 = vmatpush1.msra.mxu0 %v142
    %379 = vmatprep.subr.mxu0 0.0
    %380 = vmatpush1.msra.mxu0 %v143
    %381 = vmatprep.subr.mxu0 0.0
    %382 = vmatpush1.msra.mxu0 %v144
    %383 = vmatprep.subr.mxu0 0.0
    %384 = vmatpush1.msra.mxu0 %v145
    %385 = vmatprep.subr.mxu0 0.0
    %386 = vmatpush1.msra.mxu0 %v146
    %387 = vmatprep.subr.mxu0 0.0
    %388 = vmatpush1.msra.mxu0 %v147
    %389 = vmatprep.subr.mxu0 0.0
    %390 = vmatpush1.msra.mxu0 %v148
    %391 = vmatprep.subr.mxu0 0.0
    %392 = vmatpush1.msra.mxu0 %v149
    %393 = vmatprep.subr.mxu0 0.0
    %394 = vmatpush1.msra.mxu0 %v150
    %395 = vmatprep.subr.mxu0 0.0
    %396 = vmatpush1.msra.mxu0 %v151
    %397 = vmatprep.subr.mxu0 0.0
    %398 = vmatpush1.msra.mxu0 %v152
    %399 = vmatprep.subr.mxu0 0.0
    %400 = vmatpush1.msra.mxu0 %v153
    %401 = vmatprep.subr.mxu0 0.0
    %402 = vmatpush1.msra.mxu0 %v154
    %403 = vmatprep.subr.mxu0 0.0
    %404 = vmatpush1.msra.mxu0 %v155
    %405 = vmatprep.subr.mxu0 0.0
    %406 = vmatpush1.msra.mxu0 %v156
    %407 = vmatprep.subr.mxu0 0.0
    %408 = vmatpush1.msra.mxu0 %v157
    %409 = vmatprep.subr.mxu0 0.0
    %410 = vmatpush1.msra.mxu0 %v158
    %411 = vmatprep.subr.mxu0 0.0
    %412 = vmatpush1.msra.mxu0 %v159
    %413 = vmatprep.subr.mxu0 0.0
    %414 = vmatpush1.msra.mxu0 %v160
    %415 = vmatprep.subr.mxu0 0.0
    %416 = vmatpush1.msra.mxu0 %v161
    %417 = vmatprep.subr.mxu0 0.0
    %418 = vmatpush1.msra.mxu0 %v162
    %419 = vmatprep.subr.mxu0 0.0
    %420 = vmatpush1.msra.mxu0 %v163
    %421 = vmatprep.mubr.f32.mxu0 %v207
    %422 = vmatmul.mubr.f32.gmra.mrb[0].mxu0 %v199
    %v423 = vpop.f32.mrb[0].mxu0
    %v424 = vadd.f32 %v354, %v423
    %v425 = vpop.f32.mrb[0].mxu0
    %426 = vdwg.mxu0
    %427 = vmatprep.subr.mxu0 0.0
    %428 = vmatpush1.msra.mxu0 %v164
    %429 = vmatprep.subr.mxu0 0.0
    %430 = vmatpush1.msra.mxu0 %v165
    %431 = vmatprep.subr.mxu0 0.0
    %432 = vmatpush1.msra.mxu0 0.0
    %433 = vmatprep.subr.mxu0 0.0
    %434 = vmatpush1.msra.mxu0 0.0
    %435 = vmatprep.subr.mxu0 0.0
    %436 = vmatpush1.msra.mxu0 0.0
    %437 = vmatprep.subr.mxu0 0.0
    %438 = vmatpush1.msra.mxu0 0.0
    %439 = vmatprep.subr.mxu0 0.0
    %440 = vmatpush1.msra.mxu0 0.0
    %441 = vmatprep.subr.mxu0 0.0
    %442 = vmatpush1.msra.mxu0 0.0
    %443 = vmatprep.subr.mxu0 0.0
    %444 = vmatpush1.msra.mxu0 0.0
    %445 = vmatprep.subr.mxu0 0.0
    %446 = vmatpush1.msra.mxu0 0.0
    %447 = vmatprep.subr.mxu0 0.0
    %448 = vmatpush1.msra.mxu0 0.0
    %449 = vmatprep.subr.mxu0 0.0
    %450 = vmatpush1.msra.mxu0 0.0
    %451 = vmatprep.subr.mxu0 0.0
    %452 = vmatpush1.msra.mxu0 0.0
    %453 = vmatprep.subr.mxu0 0.0
    %454 = vmatpush1.msra.mxu0 0.0
    %455 = vmatprep.subr.mxu0 0.0
    %456 = vmatpush1.msra.mxu0 0.0
    %457 = vmatprep.subr.mxu0 0.0
    %458 = vmatpush1.msra.mxu0 0.0
    %459 = vmatprep.subr.mxu0 0.0
    %460 = vmatpush1.msra.mxu0 0.0
    %461 = vmatprep.subr.mxu0 0.0
    %462 = vmatpush1.msra.mxu0 0.0
    %463 = vmatprep.subr.mxu0 0.0
    %464 = vmatpush1.msra.mxu0 0.0
    %465 = vmatprep.subr.mxu0 0.0
    %466 = vmatpush1.msra.mxu0 0.0
    %467 = vmatprep.subr.mxu0 0.0
    %468 = vmatpush1.msra.mxu0 0.0
    %469 = vmatprep.subr.mxu0 0.0
    %470 = vmatpush1.msra.mxu0 0.0
    %471 = vmatprep.subr.mxu0 0.0
    %472 = vmatpush1.msra.mxu0 0.0
    %473 = vmatprep.subr.mxu0 0.0
    %474 = vmatpush1.msra.mxu0 0.0
    %475 = vmatprep.subr.mxu0 0.0
    %476 = vmatpush1.msra.mxu0 0.0
    %477 = vmatprep.subr.mxu0 0.0
    %478 = vmatpush1.msra.mxu0 0.0
    %479 = vmatprep.subr.mxu0 0.0
    %480 = vmatpush1.msra.mxu0 0.0
    %481 = vmatprep.subr.mxu0 0.0
    %482 = vmatpush1.msra.mxu0 0.0
    %483 = vmatprep.subr.mxu0 0.0
    %484 = vmatpush1.msra.mxu0 0.0
    %485 = vmatprep.subr.mxu0 0.0
    %486 = vmatpush1.msra.mxu0 0.0
    %487 = vmatprep.subr.mxu0 0.0
    %488 = vmatpush1.msra.mxu0 0.0
    %489 = vmatprep.subr.mxu0 0.0
    %490 = vmatpush1.msra.mxu0 0.0
    %491 = vmatprep.mubr.f32.mxu0 0.0
    %492 = vmatmul.mubr.f32.gmra.mrb[0].mxu0 %v215
    %v493 = vpop.f32.mrb[0].mxu0
    %v494 = vadd.f32 %v424, %v493
    %v495 = vpop.f32.mrb[0].mxu0
    %496 = vdwg.mxu0
    %v497 = vmul.f32 %v494, 0.2
    %v498 = vmax.f32 %v494, %v497
    %v499 = vld [vmem:[#allocation7] sm:$0xff]
    %v500 = vld [vmem:[#allocation7 + $0x8] sm:$0xff]
    %v501 = vld [vmem:[#allocation7 + $0x10] sm:$0xff]
    %v502 = vld [vmem:[#allocation7 + $0x18] sm:$0xff]
    %v503 = vld [vmem:[#allocation7 + $0x20] sm:$0xff]
    %v504 = vld [vmem:[#allocation7 + $0x28] sm:$0xff]
    %v505 = vld [vmem:[#allocation7 + $0x30] sm:$0xff]
    %v506 = vld [vmem:[#allocation7 + $0x38] sm:$0xff]
    %v507 = vld [vmem:[#allocation7 + $0x40] sm:$0xff]
    %v508 = vld [vmem:[#allocation7 + $0x48] sm:$0xff]
    %v509 = vld [vmem:[#allocation7 + $0x50] sm:$0xff]
    %v510 = vld [vmem:[#allocation7 + $0x58] sm:$0xff]
    %v511 = vld [vmem:[#allocation7 + $0x60] sm:$0xff]
    %v512 = vld [vmem:[#allocation7 + $0x68] sm:$0xff]
    %v513 = vld [vmem:[#allocation7 + $0x70] sm:$0xff]
    %v514 = vld [vmem:[#allocation7 + $0x78] sm:$0xff]
    %v515 = vld [vmem:[%s4] sm:$0x1]
    %v517 = vlaneseq
    %v518 = vshrl.u32 %v517, 7
    %v519 = vsub.s32 0, %v518
    %v520 = vrot.slane %v515, %v519
    %522 = vmatprep.subr.mxu0 0.0
    %523 = vmatpush1.msra.mxu0 %v499
    %524 = vmatprep.subr.mxu0 0.0
    %525 = vmatpush1.msra.mxu0 %v500
    %526 = vmatprep.subr.mxu0 0.0
    %527 = vmatpush1.msra.mxu0 %v501
    %528 = vmatprep.subr.mxu0 0.0
    %529 = vmatpush1.msra.mxu0 %v502
    %530 = vmatprep.subr.mxu0 0.0
    %531 = vmatpush1.msra.mxu0 %v503
    %532 = vmatprep.subr.mxu0 0.0
    %533 = vmatpush1.msra.mxu0 %v504
    %534 = vmatprep.subr.mxu0 0.0
    %535 = vmatpush1.msra.mxu0 %v505
    %536 = vmatprep.subr.mxu0 0.0
    %537 = vmatpush1.msra.mxu0 %v506
    %538 = vmatprep.subr.mxu0 0.0
    %539 = vmatpush1.msra.mxu0 %v507
    %540 = vmatprep.subr.mxu0 0.0
    %541 = vmatpush1.msra.mxu0 %v508
    %542 = vmatprep.subr.mxu0 0.0
    %543 = vmatpush1.msra.mxu0 %v509
    %544 = vmatprep.subr.mxu0 0.0
    %545 = vmatpush1.msra.mxu0 %v510
    %546 = vmatprep.subr.mxu0 0.0
    %547 = vmatpush1.msra.mxu0 %v511
    %548 = vmatprep.subr.mxu0 0.0
    %549 = vmatpush1.msra.mxu0 %v512
    %550 = vmatprep.subr.mxu0 0.0
    %551 = vmatpush1.msra.mxu0 %v513
    %552 = vmatprep.subr.mxu0 0.0
    %553 = vmatpush1.msra.mxu0 %v514
    %554 = vmatprep.subr.mxu0 0.0
    %555 = vmatpush1.msra.mxu0 0.0
    %556 = vmatprep.subr.mxu0 0.0
    %557 = vmatpush1.msra.mxu0 0.0
    %558 = vmatprep.subr.mxu0 0.0
    %559 = vmatpush1.msra.mxu0 0.0
    %560 = vmatprep.subr.mxu0 0.0
    %561 = vmatpush1.msra.mxu0 0.0
    %562 = vmatprep.subr.mxu0 0.0
    %563 = vmatpush1.msra.mxu0 0.0
    %564 = vmatprep.subr.mxu0 0.0
    %565 = vmatpush1.msra.mxu0 0.0
    %566 = vmatprep.subr.mxu0 0.0
    %567 = vmatpush1.msra.mxu0 0.0
    %568 = vmatprep.subr.mxu0 0.0
    %569 = vmatpush1.msra.mxu0 0.0
    %570 = vmatprep.subr.mxu0 0.0
    %571 = vmatpush1.msra.mxu0 0.0
    %572 = vmatprep.subr.mxu0 0.0
    %573 = vmatpush1.msra.mxu0 0.0
    %574 = vmatprep.subr.mxu0 0.0
    %575 = vmatpush1.msra.mxu0 0.0
    %576 = vmatprep.subr.mxu0 0.0
    %577 = vmatpush1.msra.mxu0 0.0
    %578 = vmatprep.subr.mxu0 0.0
    %579 = vmatpush1.msra.mxu0 0.0
    %580 = vmatprep.subr.mxu0 0.0
    %581 = vmatpush1.msra.mxu0 0.0
    %582 = vmatprep.subr.mxu0 0.0
    %583 = vmatpush1.msra.mxu0 0.0
    %584 = vmatprep.subr.mxu0 0.0
    %585 = vmatpush1.msra.mxu0 0.0
    %586 = vmatprep.mubr.f32.mxu0 0.0
    %587 = vmatmul.mubr.f32.gmra.mrb[0].mxu0 %v498
    %v588 = vpop.f32.mrb[0].mxu0
    %v589 = vadd.f32 %v520, %v588
    %v590 = vpop.f32.mrb[0].mxu0
    %591 = vdwg.mxu0
    %v592 = vmul.f32 %v589, 0.2
    %v593 = vmax.f32 %v589, %v592
    %v594 = vld [vmem:[%s5] sm:$0x1]
    %v596 = vlaneseq
    %v597 = vshrl.u32 %v596, 7
    %v598 = vsub.s32 0, %v597
    %v599 = vrot.slane %v594, %v598
    %v601 = vmul.f32 %v593, %v599
    %vm602 = vcmask 1041408
    %v603 = vsel %vm602, %v601, 0.0
    %604 = vadd.xlane.f32.xlu0 %v603
    %v605 = vpop.xlane.xlu0 %604
    %s606 = sld [smem:[#allocation2]]
    %v607 = vstv %s606
    %v608 = vadd.f32 %v605, %v607
    %vm609 = vcmask 1024
    %610 = vst.msk [vmem:[%s7] sm:$0x3] %vm609, %v608
    // Predicated region
    $region42: #{tpu_custom_call.1} parent=1 // pred_check
      _
    $region43: #{tpu_custom_call.1} parent=1 // pred_check_branch
      %612 = sbr.rel (0) target = $region45
    $region44: #{tpu_custom_call.1} parent=1 // pred_region
      _
    $region45: #{tpu_custom_call.1} parent=1 // pred_fallthru
      _
    // Predicated region
    $region46: #{tpu_custom_call.1} parent=1 // pred_check
      _
    $region47: #{tpu_custom_call.1} parent=1 // pred_check_branch
      %614 = sbr.rel (0) target = $region49
    $region48: #{tpu_custom_call.1} parent=1 // pred_region
      _
    $region49: #{tpu_custom_call.1} parent=1 // pred_fallthru
      _
    %615 = vsyncpa [#allocation4], 1
    %616 = vsyncpa [#allocation6], 1

</llo_original>
